<compile_context>
chip_gen: v7x
topology: tpu7x:2x2x1
jax: 0.10.0
libtpu: 0.0.40
codegen_flags: <defaults>
</compile_context>

<pallas_src>
import jax
import jax.numpy as jnp
from jax.experimental import pallas as pl
from jax.experimental.pallas import tpu as pltpu

IN_F, H1, H2, H3, OUT = 784, 256, 128, 64, 10
IN_PAD, H3_PAD, OUT_PAD = 896, 128, 128  # lane-dense (multiples of 128)


def _round_up(n, m):
    return ((n + m - 1) // m) * m


def mlp_kernel(x_ref,
               w1_ref, b1_ref,
               w2_ref, b2_ref,
               w3_ref, b3_ref,
               w4_ref, b4_ref,
               o_ref):
    # MXU operands cast to bf16; accumulation and all element-wise math in f32.
    x = x_ref[...].astype(jnp.bfloat16)

    # Layer 1: (TB,896) @ (896,256) + (1,256), ReLU
    h1 = jnp.dot(x, w1_ref[...], preferred_element_type=jnp.float32)
    h1 = jnp.maximum(h1 + b1_ref[...], 0.0)

    # Layer 2: (TB,256) @ (256,128) + (1,128), ReLU
    h2 = jnp.dot(h1.astype(jnp.bfloat16), w2_ref[...],
                 preferred_element_type=jnp.float32)
    h2 = jnp.maximum(h2 + b2_ref[...], 0.0)

    # Layer 3: (TB,128) @ (128,128-padded) + (1,128), ReLU  (cols 64..127 are zero)
    h3 = jnp.dot(h2.astype(jnp.bfloat16), w3_ref[...],
                 preferred_element_type=jnp.float32)
    h3 = jnp.maximum(h3 + b3_ref[...], 0.0)

    # Layer 4 (logits): (TB,128) @ (128,128-padded) + (1,128); lane-dense store,
    # real logits live in columns 0..9.
    out = jnp.dot(h3.astype(jnp.bfloat16), w4_ref[...],
                  preferred_element_type=jnp.float32)
    o_ref[...] = (out + b4_ref[...]).astype(o_ref.dtype)


def prepare_params(params):
    """Zero-pad to lane-dense shapes and cast weights to bf16 (biases stay f32)."""
    w1 = jnp.pad(params["w1"], ((0, IN_PAD - IN_F), (0, 0)))
    b1 = params["b1"]
    w2 = params["w2"]
    b2 = params["b2"]
    w3 = jnp.pad(params["w3"], ((0, 0), (0, H3_PAD - H3)))
    b3 = jnp.pad(params["b3"], ((0, 0), (0, H3_PAD - H3)))
    w4 = jnp.pad(params["w4"], ((0, H3_PAD - H3), (0, OUT_PAD - OUT)))
    b4 = jnp.pad(params["b4"], ((0, 0), (0, OUT_PAD - OUT)))
    return dict(
        w1=w1.astype(jnp.bfloat16), b1=b1.astype(jnp.float32),
        w2=w2.astype(jnp.bfloat16), b2=b2.astype(jnp.float32),
        w3=w3.astype(jnp.bfloat16), b3=b3.astype(jnp.float32),
        w4=w4.astype(jnp.bfloat16), b4=b4.astype(jnp.float32),
    )


def mlp_forward(x_flat, pp):
    """x_flat: (B, 784) float32.  pp: prepared (padded/bf16) params."""
    B = x_flat.shape[0]
    TB = min(256, _round_up(B, 8))          # batch tile (multiple of 8 for f32)
    B_pad = _round_up(B, TB)
    x_p = jnp.pad(x_flat.astype(jnp.float32),
                  ((0, B_pad - B), (0, IN_PAD - IN_F)))

    def resident(shape):
        # Constant block index: fetched once, stays VMEM-resident across the grid.
        return pl.BlockSpec(shape, lambda i: (0, 0))

    in_specs = [
        pl.BlockSpec((TB, IN_PAD), lambda i: (i, 0)),   # x tile follows the grid
        resident((IN_PAD, H1)),     resident((1, H1)),
        resident((H1, H2)),         resident((1, H2)),
        resident((H2, H3_PAD)),     resident((1, H3_PAD)),
        resident((H3_PAD, OUT_PAD)), resident((1, OUT_PAD)),
    ]

    out = pl.pallas_call(
        mlp_kernel,
        out_shape=jax.ShapeDtypeStruct((B_pad, OUT_PAD), jnp.float32),
        grid=(B_pad // TB,),
        in_specs=in_specs,
        out_specs=pl.BlockSpec((TB, OUT_PAD), lambda i: (i, 0)),
        compiler_params=pltpu.CompilerParams(
            dimension_semantics=("parallel",),   # lets v7x shard over both TCs
            vmem_limit_bytes=16 << 20,           # safe on v7x's 64 MiB VMEM
        ),
    )(x_p, pp["w1"], pp["b1"], pp["w2"], pp["b2"],
      pp["w3"], pp["b3"], pp["w4"], pp["b4"])

    return out[:B, :OUT]


def init_params(key):
    """Deterministic init mirroring nn.Linear shapes.

    PyTorch nn.Linear stores weight as (out, in); we store the transpose
    (in, out) so the kernel does x @ W directly.  Biases are (1, out).
    """
    dims = [(IN_F, H1), (H1, H2), (H2, H3), (H3, OUT)]
    params = {}
    for i, (fan_in, fan_out) in enumerate(dims, start=1):
        key, kw, kb = jax.random.split(key, 3)
        bound = 1.0 / jnp.sqrt(fan_in)
        params[f"w{i}"] = jax.random.uniform(
            kw, (fan_in, fan_out), jnp.float32, -bound, bound)
        params[f"b{i}"] = jax.random.uniform(
            kb, (1, fan_out), jnp.float32, -bound, bound)
    return params


def mlp_reference(x_flat, pp):
    """Reference with identical numerics (bf16 MXU operands, f32 accumulation)."""
    h = jnp.pad(x_flat.astype(jnp.float32), ((0, 0), (0, IN_PAD - IN_F)))
    for i in range(1, 4):
        h = jnp.maximum(
            jnp.dot(h.astype(jnp.bfloat16), pp[f"w{i}"],
                    preferred_element_type=jnp.float32) + pp[f"b{i}"], 0.0)
    out = jnp.dot(h.astype(jnp.bfloat16), pp["w4"],
                  preferred_element_type=jnp.float32) + pp["b4"]
    return out[:, :OUT]


if __name__ == "__main__":
    key = jax.random.PRNGKey(0)
    key, kx = jax.random.split(key)

    B = 8
    # Input corresponds to flattened 28x28 images: (B, 1, 28, 28) -> view -> (B, 784)
    x = jax.random.normal(kx, (B, 1, 28, 28), jnp.float32)
    x_flat = x.reshape(B, -1)

    params = init_params(key)
    pp = prepare_params(params)

    out = mlp_forward(x_flat, pp)
    jax.block_until_ready(out)

    ref = mlp_reference(x_flat, pp)
    assert out.shape == (B, 10)
    assert jnp.allclose(out, ref, atol=1e-3, rtol=1e-3), \
        float(jnp.max(jnp.abs(out - ref)))

    print("KERNEL_OK")
</pallas_src>

<mosaic_0001>
module attributes {stable_mosaic.version = 11 : i64} {
  func.func @mlp_kernel(%arg0: i32, %arg1: memref<8x896xf32, #tpu.memory_space<vmem>>, %arg2: memref<896x256xbf16, #tpu.memory_space<vmem>>, %arg3: memref<1x256xf32, #tpu.memory_space<vmem>>, %arg4: memref<256x128xbf16, #tpu.memory_space<vmem>>, %arg5: memref<1x128xf32, #tpu.memory_space<vmem>>, %arg6: memref<128x128xbf16, #tpu.memory_space<vmem>>, %arg7: memref<1x128xf32, #tpu.memory_space<vmem>>, %arg8: memref<128x128xbf16, #tpu.memory_space<vmem>>, %arg9: memref<1x128xf32, #tpu.memory_space<vmem>>, %arg10: memref<8x128xf32, #tpu.memory_space<vmem>>) attributes {dimension_semantics = [#tpu.dimension_semantics<parallel>], iteration_bounds = array<i64: 1>, scalar_prefetch = 0 : i64, scratch_operands = 0 : i64, tpu.core_type = #tpu.core_type<tc>, window_params = [{transform_indices = @transform_0, window_bounds = array<i64: 8, 896>}, {pipeline_mode = #tpu.pipeline_mode<synchronous>, transform_indices = @transform_1, window_bounds = array<i64: 896, 256>}, {pipeline_mode = #tpu.pipeline_mode<synchronous>, transform_indices = @transform_2, window_bounds = array<i64: 1, 256>}, {pipeline_mode = #tpu.pipeline_mode<synchronous>, transform_indices = @transform_3, window_bounds = array<i64: 256, 128>}, {pipeline_mode = #tpu.pipeline_mode<synchronous>, transform_indices = @transform_4, window_bounds = array<i64: 1, 128>}, {pipeline_mode = #tpu.pipeline_mode<synchronous>, transform_indices = @transform_5, window_bounds = array<i64: 128, 128>}, {pipeline_mode = #tpu.pipeline_mode<synchronous>, transform_indices = @transform_6, window_bounds = array<i64: 1, 128>}, {pipeline_mode = #tpu.pipeline_mode<synchronous>, transform_indices = @transform_7, window_bounds = array<i64: 128, 128>}, {pipeline_mode = #tpu.pipeline_mode<synchronous>, transform_indices = @transform_8, window_bounds = array<i64: 1, 128>}, {transform_indices = @transform_9, window_bounds = array<i64: 8, 128>}]} {
    %c0 = arith.constant 0 : index
    %c0_0 = arith.constant 0 : index
    %0 = vector.load %arg1[%c0, %c0_0] : memref<8x896xf32, #tpu.memory_space<vmem>>, vector<8x896xf32>
    %1 = arith.truncf %0 : vector<8x896xf32> to vector<8x896xbf16>
    %c0_1 = arith.constant 0 : index
    %c0_2 = arith.constant 0 : index
    %2 = vector.load %arg2[%c0_1, %c0_2] : memref<896x256xbf16, #tpu.memory_space<vmem>>, vector<896x256xbf16>
    %cst = arith.constant dense<0.000000e+00> : vector<8x256xf32>
    %3 = tpu.matmul %1, %2, %cst {dimension_numbers = #tpu.dot_dimension_numbers<[1], [0], [0], [1], [0, 0, 1, 1], [], []>} : vector<8x896xbf16>, vector<896x256xbf16>, vector<8x256xf32> -> vector<8x256xf32>
    %c0_3 = arith.constant 0 : index
    %c0_4 = arith.constant 0 : index
    %4 = vector.load %arg3[%c0_3, %c0_4] : memref<1x256xf32, #tpu.memory_space<vmem>>, vector<1x256xf32>
    %5 = vector.broadcast %4 : vector<1x256xf32> to vector<8x256xf32>
    %6 = arith.addf %3, %5 : vector<8x256xf32>
    %cst_5 = arith.constant 0.000000e+00 : f32
    %7 = vector.broadcast %cst_5 : f32 to vector<8x256xf32>
    %8 = arith.maximumf %6, %7 : vector<8x256xf32>
    %9 = arith.truncf %8 : vector<8x256xf32> to vector<8x256xbf16>
    %c0_6 = arith.constant 0 : index
    %c0_7 = arith.constant 0 : index
    %10 = vector.load %arg4[%c0_6, %c0_7] : memref<256x128xbf16, #tpu.memory_space<vmem>>, vector<256x128xbf16>
    %cst_8 = arith.constant dense<0.000000e+00> : vector<8x128xf32>
    %11 = tpu.matmul %9, %10, %cst_8 {dimension_numbers = #tpu.dot_dimension_numbers<[1], [0], [0], [1], [0, 0, 1, 1], [], []>} : vector<8x256xbf16>, vector<256x128xbf16>, vector<8x128xf32> -> vector<8x128xf32>
    %c0_9 = arith.constant 0 : index
    %c0_10 = arith.constant 0 : index
    %12 = vector.load %arg5[%c0_9, %c0_10] : memref<1x128xf32, #tpu.memory_space<vmem>>, vector<1x128xf32>
    %13 = vector.broadcast %12 : vector<1x128xf32> to vector<8x128xf32>
    %14 = arith.addf %11, %13 : vector<8x128xf32>
    %cst_11 = arith.constant 0.000000e+00 : f32
    %15 = vector.broadcast %cst_11 : f32 to vector<8x128xf32>
    %16 = arith.maximumf %14, %15 : vector<8x128xf32>
    %17 = arith.truncf %16 : vector<8x128xf32> to vector<8x128xbf16>
    %c0_12 = arith.constant 0 : index
    %c0_13 = arith.constant 0 : index
    %18 = vector.load %arg6[%c0_12, %c0_13] : memref<128x128xbf16, #tpu.memory_space<vmem>>, vector<128x128xbf16>
    %cst_14 = arith.constant dense<0.000000e+00> : vector<8x128xf32>
    %19 = tpu.matmul %17, %18, %cst_14 {dimension_numbers = #tpu.dot_dimension_numbers<[1], [0], [0], [1], [0, 0, 1, 1], [], []>} : vector<8x128xbf16>, vector<128x128xbf16>, vector<8x128xf32> -> vector<8x128xf32>
    %c0_15 = arith.constant 0 : index
    %c0_16 = arith.constant 0 : index
    %20 = vector.load %arg7[%c0_15, %c0_16] : memref<1x128xf32, #tpu.memory_space<vmem>>, vector<1x128xf32>
    %21 = vector.broadcast %20 : vector<1x128xf32> to vector<8x128xf32>
    %22 = arith.addf %19, %21 : vector<8x128xf32>
    %cst_17 = arith.constant 0.000000e+00 : f32
    %23 = vector.broadcast %cst_17 : f32 to vector<8x128xf32>
    %24 = arith.maximumf %22, %23 : vector<8x128xf32>
    %25 = arith.truncf %24 : vector<8x128xf32> to vector<8x128xbf16>
    %c0_18 = arith.constant 0 : index
    %c0_19 = arith.constant 0 : index
    %26 = vector.load %arg8[%c0_18, %c0_19] : memref<128x128xbf16, #tpu.memory_space<vmem>>, vector<128x128xbf16>
    %cst_20 = arith.constant dense<0.000000e+00> : vector<8x128xf32>
    %27 = tpu.matmul %25, %26, %cst_20 {dimension_numbers = #tpu.dot_dimension_numbers<[1], [0], [0], [1], [0, 0, 1, 1], [], []>} : vector<8x128xbf16>, vector<128x128xbf16>, vector<8x128xf32> -> vector<8x128xf32>
    %c0_21 = arith.constant 0 : index
    %c0_22 = arith.constant 0 : index
    %28 = vector.load %arg9[%c0_21, %c0_22] : memref<1x128xf32, #tpu.memory_space<vmem>>, vector<1x128xf32>
    %29 = vector.broadcast %28 : vector<1x128xf32> to vector<8x128xf32>
    %30 = arith.addf %27, %29 : vector<8x128xf32>
    %c0_23 = arith.constant 0 : index
    %c0_24 = arith.constant 0 : index
    %31 = vector.load %arg10[%c0_23, %c0_24] : memref<8x128xf32, #tpu.memory_space<vmem>>, vector<8x128xf32>
    tpu.vector_store %arg10[%c0_23, %c0_24], %30 {strides = array<i32>} : memref<8x128xf32, #tpu.memory_space<vmem>>, vector<8x128xf32>,
    return
  }
  func.func @transform_0(%arg0: i32) -> (i32, i32) {
    %c0_i32 = arith.constant 0 : i32
    %c0_i32_0 = arith.constant 0 : i32
    return %arg0, %c0_i32 : i32, i32
  }
  func.func @transform_1(%arg0: i32) -> (i32, i32) {
    %c0_i32 = arith.constant 0 : i32
    %c0_i32_0 = arith.constant 0 : i32
    %c0_i32_1 = arith.constant 0 : i32
    return %c0_i32, %c0_i32_0 : i32, i32
  }
  func.func @transform_2(%arg0: i32) -> (i32, i32) {
    %c0_i32 = arith.constant 0 : i32
    %c0_i32_0 = arith.constant 0 : i32
    %c0_i32_1 = arith.constant 0 : i32
    return %c0_i32, %c0_i32_0 : i32, i32
  }
  func.func @transform_3(%arg0: i32) -> (i32, i32) {
    %c0_i32 = arith.constant 0 : i32
    %c0_i32_0 = arith.constant 0 : i32
    %c0_i32_1 = arith.constant 0 : i32
    return %c0_i32, %c0_i32_0 : i32, i32
  }
  func.func @transform_4(%arg0: i32) -> (i32, i32) {
    %c0_i32 = arith.constant 0 : i32
    %c0_i32_0 = arith.constant 0 : i32
    %c0_i32_1 = arith.constant 0 : i32
    return %c0_i32, %c0_i32_0 : i32, i32
  }
  func.func @transform_5(%arg0: i32) -> (i32, i32) {
    %c0_i32 = arith.constant 0 : i32
    %c0_i32_0 = arith.constant 0 : i32
    %c0_i32_1 = arith.constant 0 : i32
    return %c0_i32, %c0_i32_0 : i32, i32
  }
  func.func @transform_6(%arg0: i32) -> (i32, i32) {
    %c0_i32 = arith.constant 0 : i32
    %c0_i32_0 = arith.constant 0 : i32
    %c0_i32_1 = arith.constant 0 : i32
    return %c0_i32, %c0_i32_0 : i32, i32
  }
  func.func @transform_7(%arg0: i32) -> (i32, i32) {
    %c0_i32 = arith.constant 0 : i32
    %c0_i32_0 = arith.constant 0 : i32
    %c0_i32_1 = arith.constant 0 : i32
    return %c0_i32, %c0_i32_0 : i32, i32
  }
  func.func @transform_8(%arg0: i32) -> (i32, i32) {
    %c0_i32 = arith.constant 0 : i32
    %c0_i32_0 = arith.constant 0 : i32
    %c0_i32_1 = arith.constant 0 : i32
    return %c0_i32, %c0_i32_0 : i32, i32
  }
  func.func @transform_9(%arg0: i32) -> (i32, i32) {
    %c0_i32 = arith.constant 0 : i32
    %c0_i32_0 = arith.constant 0 : i32
    return %arg0, %c0_i32 : i32, i32
  }
}

</mosaic_0001>

<llo_original>
// kernel: tpu_custom_call.1
$region0: #{tpu_custom_call.1}
  #allocation0 [shape = 'u32[]', space=smem, size = 0x4, offset = 0x4, fixed_abs, tag = 'smem constant byte address 0x4 - core index']
  #allocation1 [shape = 'u32[144,128]{1,0:T(1,128)}', space=vmem, size = 0x12000, scoped, tag = 'internal scratch']
  %s0 = inlined_call_operand.hbm [shape: f32[8,896], index: 0, kind: input, shape index: {}]
  %s1 = inlined_call_operand.hbm [shape: bf16[896,256], index: 1, kind: input, shape index: {}]
  %s2 = inlined_call_operand.vmem [shape: f32[1,256], index: 2, kind: input, shape index: {}]
  %s3 = inlined_call_operand.hbm [shape: bf16[256,128], index: 3, kind: input, shape index: {}]
  %s4 = inlined_call_operand.vmem [shape: f32[1,128], index: 4, kind: input, shape index: {}]
  %s5 = inlined_call_operand.hbm [shape: bf16[128,128], index: 5, kind: input, shape index: {}]
  %s6 = inlined_call_operand.vmem [shape: f32[1,128], index: 6, kind: input, shape index: {}]
  %s7 = inlined_call_operand.hbm [shape: bf16[128,128], index: 7, kind: input, shape index: {}]
  %s8 = inlined_call_operand.vmem [shape: f32[1,128], index: 8, kind: input, shape index: {}]
  %s9 = inlined_call_operand.hbm [shape: f32[8,128], index: 9, kind: output, shape index: {}]
  %s10 = sld [smem:[#allocation0]]
  $region66: #{tpu_custom_call.1} parent=0
    _
  %s12 = ssub.s32 1, %s10
  %s13 = scalar_select 0, %s12, %s10
  $region1: #{tpu_custom_call.1} parent=0
    #allocation2 [shape = 'u8[28672]{0}', space=vmem, size = 0x7000, scoped, tag = 'input window, operand 0, single buffered']
    #allocation3 [shape = 's32[1]{0}', space=sflag, size = 0x4, scoped, tag = 'scoped memory for tpu_custom_call.1']
    #allocation4 [shape = 's32[1]{0}', space=sflag, size = 0x4, scoped, tag = 'scoped memory for tpu_custom_call.1']
    #allocation5 [shape = 'u8[458752]{0}', space=vmem, size = 0x70000, scoped, tag = 'input window, operand 1, single buffered']
    #allocation6 [shape = 's32[1]{0}', space=sflag, size = 0x4, scoped, tag = 'scoped memory for tpu_custom_call.1']
    #allocation7 [shape = 'u8[65536]{0}', space=vmem, size = 0x10000, scoped, tag = 'input window, operand 3, single buffered']
    #allocation8 [shape = 'u8[32768]{0}', space=vmem, size = 0x8000, scoped, tag = 'input window, operand 5, single buffered']
    #allocation9 [shape = 's32[1]{0}', space=sflag, size = 0x4, scoped, tag = 'scoped memory for tpu_custom_call.1']
    #allocation10 [shape = 'u8[32768]{0}', space=vmem, size = 0x8000, scoped, tag = 'input window, operand 7, single buffered']
    #allocation11 [shape = 'u8[4096]{0}', space=vmem, size = 0x1000, scoped, tag = 'output window, operand 0, single buffered']
    %14 = vsyncpa [#allocation3], 0
    %15 = vsyncpa [#allocation6], 0
    %16 = vsyncpa [#allocation9], 0
    %17 = vsyncpa [#allocation4], 0
    // Predicated region
    $region2: #{tpu_custom_call.1} parent=1 // pred_check
      _
    $region3: #{tpu_custom_call.1} parent=1 // pred_check_branch
      %19 = sbr.rel (0) target = $region5
    $region4: #{tpu_custom_call.1} parent=1 // pred_region
      %s21 = ssub.s32 896, 896
      %22 = vsyncadd [#allocation3], %s21
      %s24 = sshll.u32 [#allocation2], 4
      %s25 = int_to_ptr.vmem [resolvable:$true] %s24
      %27 = dma.hbm_to_vmem [thread:$0]  %s0, 896, %s25, [#allocation3]
    $region5: #{tpu_custom_call.1} parent=1 // pred_fallthru
      _
    // Predicated region
    $region6: #{tpu_custom_call.1} parent=1 // pred_check
      _
    $region7: #{tpu_custom_call.1} parent=1 // pred_check_branch
      %29 = sbr.rel (0) target = $region9
    $region8: #{tpu_custom_call.1} parent=1 // pred_region
      %s31 = ssub.s32 14336, 14336
      %32 = vsyncadd [#allocation6], %s31
      %s33 = sshll.u32 [#allocation5], 4
      %s34 = int_to_ptr.vmem [resolvable:$true] %s33
      %39 = dma.hbm_to_vmem [thread:$0]  %s1, 14336, %s34, [#allocation6], 128, 128, 8
    $region9: #{tpu_custom_call.1} parent=1 // pred_fallthru
      _
    // Predicated region
    $region10: #{tpu_custom_call.1} parent=1 // pred_check
      _
    $region11: #{tpu_custom_call.1} parent=1 // pred_check_branch
      %41 = sbr.rel (0) target = $region13
    $region12: #{tpu_custom_call.1} parent=1 // pred_region
      _
    $region13: #{tpu_custom_call.1} parent=1 // pred_fallthru
      _
    // Predicated region
    $region14: #{tpu_custom_call.1} parent=1 // pred_check
      _
    $region15: #{tpu_custom_call.1} parent=1 // pred_check_branch
      %43 = sbr.rel (0) target = $region17
    $region16: #{tpu_custom_call.1} parent=1 // pred_region
      %s45 = ssub.s32 2048, 2048
      %46 = vsyncadd [#allocation6], %s45
      %s47 = sshll.u32 [#allocation7], 4
      %s48 = int_to_ptr.vmem [resolvable:$true] %s47
      %53 = dma.hbm_to_vmem [thread:$0]  %s3, 2048, %s48, [#allocation6], 64, 64, 4
    $region17: #{tpu_custom_call.1} parent=1 // pred_fallthru
      _
    // Predicated region
    $region18: #{tpu_custom_call.1} parent=1 // pred_check
      _
    $region19: #{tpu_custom_call.1} parent=1 // pred_check_branch
      %55 = sbr.rel (0) target = $region21
    $region20: #{tpu_custom_call.1} parent=1 // pred_region
      _
    $region21: #{tpu_custom_call.1} parent=1 // pred_fallthru
      _
    // Predicated region
    $region22: #{tpu_custom_call.1} parent=1 // pred_check
      _
    $region23: #{tpu_custom_call.1} parent=1 // pred_check_branch
      %57 = sbr.rel (0) target = $region25
    $region24: #{tpu_custom_call.1} parent=1 // pred_region
      %s59 = ssub.s32 1024, 1024
      %60 = vsyncadd [#allocation9], %s59
      %s61 = sshll.u32 [#allocation8], 4
      %s62 = int_to_ptr.vmem [resolvable:$true] %s61
      %67 = dma.hbm_to_vmem [thread:$0]  %s5, 1024, %s62, [#allocation9], 64, 64, 4
    $region25: #{tpu_custom_call.1} parent=1 // pred_fallthru
      _
    // Predicated region
    $region26: #{tpu_custom_call.1} parent=1 // pred_check
      _
    $region27: #{tpu_custom_call.1} parent=1 // pred_check_branch
      %69 = sbr.rel (0) target = $region29
    $region28: #{tpu_custom_call.1} parent=1 // pred_region
      _
    $region29: #{tpu_custom_call.1} parent=1 // pred_fallthru
      _
    // Predicated region
    $region30: #{tpu_custom_call.1} parent=1 // pred_check
      _
    $region31: #{tpu_custom_call.1} parent=1 // pred_check_branch
      %71 = sbr.rel (0) target = $region33
    $region32: #{tpu_custom_call.1} parent=1 // pred_region
      %s73 = ssub.s32 1024, 1024
      %74 = vsyncadd [#allocation9], %s73
      %s75 = sshll.u32 [#allocation10], 4
      %s76 = int_to_ptr.vmem [resolvable:$true] %s75
      %81 = dma.hbm_to_vmem [thread:$0]  %s7, 1024, %s76, [#allocation9], 64, 64, 4
    $region33: #{tpu_custom_call.1} parent=1 // pred_fallthru
      _
    // Predicated region
    $region34: #{tpu_custom_call.1} parent=1 // pred_check
      _
    $region35: #{tpu_custom_call.1} parent=1 // pred_check_branch
      %83 = sbr.rel (0) target = $region37
    $region36: #{tpu_custom_call.1} parent=1 // pred_region
      _
    $region37: #{tpu_custom_call.1} parent=1 // pred_fallthru
      _
    // Predicated region
    $region38: #{tpu_custom_call.1} parent=1 // pred_check
      _
    $region39: #{tpu_custom_call.1} parent=1 // pred_check_branch
      %85 = sbr.rel (0) target = $region41
    $region40: #{tpu_custom_call.1} parent=1 // pred_region
      %86 = dma.done [#allocation3], 896
    $region41: #{tpu_custom_call.1} parent=1 // pred_fallthru
      _
    // Predicated region
    $region42: #{tpu_custom_call.1} parent=1 // pred_check
      _
    $region43: #{tpu_custom_call.1} parent=1 // pred_check_branch
      %88 = sbr.rel (0) target = $region45
    $region44: #{tpu_custom_call.1} parent=1 // pred_region
      %89 = dma.done [#allocation6], 14336
    $region45: #{tpu_custom_call.1} parent=1 // pred_fallthru
      _
    // Predicated region
    $region46: #{tpu_custom_call.1} parent=1 // pred_check
      _
    $region47: #{tpu_custom_call.1} parent=1 // pred_check_branch
      %91 = sbr.rel (0) target = $region49
    $region48: #{tpu_custom_call.1} parent=1 // pred_region
      %92 = dma.done [#allocation6], 2048
    $region49: #{tpu_custom_call.1} parent=1 // pred_fallthru
      _
    // Predicated region
    $region50: #{tpu_custom_call.1} parent=1 // pred_check
      _
    $region51: #{tpu_custom_call.1} parent=1 // pred_check_branch
      %94 = sbr.rel (0) target = $region53
    $region52: #{tpu_custom_call.1} parent=1 // pred_region
      %95 = dma.done [#allocation9], 1024
    $region53: #{tpu_custom_call.1} parent=1 // pred_fallthru
      _
    // Predicated region
    $region54: #{tpu_custom_call.1} parent=1 // pred_check
      _
    $region55: #{tpu_custom_call.1} parent=1 // pred_check_branch
      %97 = sbr.rel (0) target = $region57
    $region56: #{tpu_custom_call.1} parent=1 // pred_region
      %98 = dma.done [#allocation9], 1024
    $region57: #{tpu_custom_call.1} parent=1 // pred_fallthru
      _
    %v100 = vld [vmem:[#allocation2] sm:$0xff]
    %v101 = vld [vmem:[#allocation2 + $0x8] sm:$0xff]
    %v102 = vld [vmem:[#allocation2 + $0x10] sm:$0xff]
    %v103 = vld [vmem:[#allocation2 + $0x18] sm:$0xff]
    %v104 = vld [vmem:[#allocation2 + $0x20] sm:$0xff]
    %v105 = vld [vmem:[#allocation2 + $0x28] sm:$0xff]
    %v106 = vld [vmem:[#allocation2 + $0x30] sm:$0xff]
    %v107 = vpack.c.bf16 %v100, %v100
    %v108 = vpack.c.bf16 %v101, %v101
    %v109 = vpack.c.bf16 %v102, %v102
    %v110 = vpack.c.bf16 %v103, %v103
    %v111 = vpack.c.bf16 %v104, %v104
    %v112 = vpack.c.bf16 %v105, %v105
    %v113 = vpack.c.bf16 %v106, %v106
    %v114 = vld [vmem:[#allocation5] sm:$0xff]
    %v115 = vld [vmem:[#allocation5 + $0x8] sm:$0xff]
    %v116 = vld [vmem:[#allocation5 + $0x10] sm:$0xff]
    %v117 = vld [vmem:[#allocation5 + $0x18] sm:$0xff]
    %v118 = vld [vmem:[#allocation5 + $0x20] sm:$0xff]
    %v119 = vld [vmem:[#allocation5 + $0x28] sm:$0xff]
    %v120 = vld [vmem:[#allocation5 + $0x30] sm:$0xff]
    %v121 = vld [vmem:[#allocation5 + $0x38] sm:$0xff]
    %v122 = vld [vmem:[#allocation5 + $0x40] sm:$0xff]
    %v123 = vld [vmem:[#allocation5 + $0x48] sm:$0xff]
    %v124 = vld [vmem:[#allocation5 + $0x50] sm:$0xff]
    %v125 = vld [vmem:[#allocation5 + $0x58] sm:$0xff]
    %v126 = vld [vmem:[#allocation5 + $0x60] sm:$0xff]
    %v127 = vld [vmem:[#allocation5 + $0x68] sm:$0xff]
    %v128 = vld [vmem:[#allocation5 + $0x70] sm:$0xff]
    %v129 = vld [vmem:[#allocation5 + $0x78] sm:$0xff]
    %v130 = vld [vmem:[#allocation5 + $0x80] sm:$0xff]
    %v131 = vld [vmem:[#allocation5 + $0x88] sm:$0xff]
    %v132 = vld [vmem:[#allocation5 + $0x90] sm:$0xff]
    %v133 = vld [vmem:[#allocation5 + $0x98] sm:$0xff]
    %v134 = vld [vmem:[#allocation5 + $0xa0] sm:$0xff]
    %v135 = vld [vmem:[#allocation5 + $0xa8] sm:$0xff]
    %v136 = vld [vmem:[#allocation5 + $0xb0] sm:$0xff]
    %v137 = vld [vmem:[#allocation5 + $0xb8] sm:$0xff]
    %v138 = vld [vmem:[#allocation5 + $0xc0] sm:$0xff]
    %v139 = vld [vmem:[#allocation5 + $0xc8] sm:$0xff]
    %v140 = vld [vmem:[#allocation5 + $0xd0] sm:$0xff]
    %v141 = vld [vmem:[#allocation5 + $0xd8] sm:$0xff]
    %v142 = vld [vmem:[#allocation5 + $0xe0] sm:$0xff]
    %v143 = vld [vmem:[#allocation5 + $0xe8] sm:$0xff]
    %v144 = vld [vmem:[#allocation5 + $0xf0] sm:$0xff]
    %v145 = vld [vmem:[#allocation5 + $0xf8] sm:$0xff]
    %v146 = vld [vmem:[#allocation5 + $0x100] sm:$0xff]
    %v147 = vld [vmem:[#allocation5 + $0x108] sm:$0xff]
    %v148 = vld [vmem:[#allocation5 + $0x110] sm:$0xff]
    %v149 = vld [vmem:[#allocation5 + $0x118] sm:$0xff]
    %v150 = vld [vmem:[#allocation5 + $0x120] sm:$0xff]
    %v151 = vld [vmem:[#allocation5 + $0x128] sm:$0xff]
    %v152 = vld [vmem:[#allocation5 + $0x130] sm:$0xff]
    %v153 = vld [vmem:[#allocation5 + $0x138] sm:$0xff]
    %v154 = vld [vmem:[#allocation5 + $0x140] sm:$0xff]
    %v155 = vld [vmem:[#allocation5 + $0x148] sm:$0xff]
    %v156 = vld [vmem:[#allocation5 + $0x150] sm:$0xff]
    %v157 = vld [vmem:[#allocation5 + $0x158] sm:$0xff]
    %v158 = vld [vmem:[#allocation5 + $0x160] sm:$0xff]
    %v159 = vld [vmem:[#allocation5 + $0x168] sm:$0xff]
    %v160 = vld [vmem:[#allocation5 + $0x170] sm:$0xff]
    %v161 = vld [vmem:[#allocation5 + $0x178] sm:$0xff]
    %v162 = vld [vmem:[#allocation5 + $0x180] sm:$0xff]
    %v163 = vld [vmem:[#allocation5 + $0x188] sm:$0xff]
    %v164 = vld [vmem:[#allocation5 + $0x190] sm:$0xff]
    %v165 = vld [vmem:[#allocation5 + $0x198] sm:$0xff]
    %v166 = vld [vmem:[#allocation5 + $0x1a0] sm:$0xff]
    %v167 = vld [vmem:[#allocation5 + $0x1a8] sm:$0xff]
    %v168 = vld [vmem:[#allocation5 + $0x1b0] sm:$0xff]
    %v169 = vld [vmem:[#allocation5 + $0x1b8] sm:$0xff]
    %v170 = vld [vmem:[#allocation5 + $0x1c0] sm:$0xff]
    %v171 = vld [vmem:[#allocation5 + $0x1c8] sm:$0xff]
    %v172 = vld [vmem:[#allocation5 + $0x1d0] sm:$0xff]
    %v173 = vld [vmem:[#allocation5 + $0x1d8] sm:$0xff]
    %v174 = vld [vmem:[#allocation5 + $0x1e0] sm:$0xff]
    %v175 = vld [vmem:[#allocation5 + $0x1e8] sm:$0xff]
    %v176 = vld [vmem:[#allocation5 + $0x1f0] sm:$0xff]
    %v177 = vld [vmem:[#allocation5 + $0x1f8] sm:$0xff]
    %v178 = vld [vmem:[#allocation5 + $0x200] sm:$0xff]
    %v179 = vld [vmem:[#allocation5 + $0x208] sm:$0xff]
    %v180 = vld [vmem:[#allocation5 + $0x210] sm:$0xff]
    %v181 = vld [vmem:[#allocation5 + $0x218] sm:$0xff]
    %v182 = vld [vmem:[#allocation5 + $0x220] sm:$0xff]
    %v183 = vld [vmem:[#allocation5 + $0x228] sm:$0xff]
    %v184 = vld [vmem:[#allocation5 + $0x230] sm:$0xff]
    %v185 = vld [vmem:[#allocation5 + $0x238] sm:$0xff]
    %v186 = vld [vmem:[#allocation5 + $0x240] sm:$0xff]
    %v187 = vld [vmem:[#allocation5 + $0x248] sm:$0xff]
    %v188 = vld [vmem:[#allocation5 + $0x250] sm:$0xff]
    %v189 = vld [vmem:[#allocation5 + $0x258] sm:$0xff]
    %v190 = vld [vmem:[#allocation5 + $0x260] sm:$0xff]
    %v191 = vld [vmem:[#allocation5 + $0x268] sm:$0xff]
    %v192 = vld [vmem:[#allocation5 + $0x270] sm:$0xff]
    %v193 = vld [vmem:[#allocation5 + $0x278] sm:$0xff]
    %v194 = vld [vmem:[#allocation5 + $0x280] sm:$0xff]
    %v195 = vld [vmem:[#allocation5 + $0x288] sm:$0xff]
    %v196 = vld [vmem:[#allocation5 + $0x290] sm:$0xff]
    %v197 = vld [vmem:[#allocation5 + $0x298] sm:$0xff]
    %v198 = vld [vmem:[#allocation5 + $0x2a0] sm:$0xff]
    %v199 = vld [vmem:[#allocation5 + $0x2a8] sm:$0xff]
    %v200 = vld [vmem:[#allocation5 + $0x2b0] sm:$0xff]
    %v201 = vld [vmem:[#allocation5 + $0x2b8] sm:$0xff]
    %v202 = vld [vmem:[#allocation5 + $0x2c0] sm:$0xff]
    %v203 = vld [vmem:[#allocation5 + $0x2c8] sm:$0xff]
    %v204 = vld [vmem:[#allocation5 + $0x2d0] sm:$0xff]
    %v205 = vld [vmem:[#allocation5 + $0x2d8] sm:$0xff]
    %v206 = vld [vmem:[#allocation5 + $0x2e0] sm:$0xff]
    %v207 = vld [vmem:[#allocation5 + $0x2e8] sm:$0xff]
    %v208 = vld [vmem:[#allocation5 + $0x2f0] sm:$0xff]
    %v209 = vld [vmem:[#allocation5 + $0x2f8] sm:$0xff]
    %v210 = vld [vmem:[#allocation5 + $0x300] sm:$0xff]
    %v211 = vld [vmem:[#allocation5 + $0x308] sm:$0xff]
    %v212 = vld [vmem:[#allocation5 + $0x310] sm:$0xff]
    %v213 = vld [vmem:[#allocation5 + $0x318] sm:$0xff]
    %v214 = vld [vmem:[#allocation5 + $0x320] sm:$0xff]
    %v215 = vld [vmem:[#allocation5 + $0x328] sm:$0xff]
    %v216 = vld [vmem:[#allocation5 + $0x330] sm:$0xff]
    %v217 = vld [vmem:[#allocation5 + $0x338] sm:$0xff]
    %v218 = vld [vmem:[#allocation5 + $0x340] sm:$0xff]
    %v219 = vld [vmem:[#allocation5 + $0x348] sm:$0xff]
    %v220 = vld [vmem:[#allocation5 + $0x350] sm:$0xff]
    %v221 = vld [vmem:[#allocation5 + $0x358] sm:$0xff]
    %v222 = vld [vmem:[#allocation5 + $0x360] sm:$0xff]
    %v223 = vld [vmem:[#allocation5 + $0x368] sm:$0xff]
    %v224 = vld [vmem:[#allocation5 + $0x370] sm:$0xff]
    %v225 = vld [vmem:[#allocation5 + $0x378] sm:$0xff]
    %v226 = vld [vmem:[%s2] sm:$0x3]
    %v228 = vlaneseq
    %v229 = vshrl.u32 %v228, 7
    %v230 = vsub.s32 0, %v229
    %v231 = vrot.slane %v226, %v230
    %v232 = vlaneseq
    %v233 = vshrl.u32 %v232, 7
    %v234 = vsub.s32 1, %v233
    %v235 = vrot.slane %v226, %v234
    %v350 = vunpack.c.l.b16 %v114
    %v351 = vunpack.c.h.b16 %v114
    %v352 = vunpack.c.l.b16 %v115
    %v353 = vunpack.c.h.b16 %v115
    %v354 = vunpack.c.l.b16 %v116
    %v355 = vunpack.c.h.b16 %v116
    %v356 = vunpack.c.l.b16 %v117
    %v357 = vunpack.c.h.b16 %v117
    %v358 = vunpack.c.l.b16 %v118
    %v359 = vunpack.c.h.b16 %v118
    %v360 = vunpack.c.l.b16 %v119
    %v361 = vunpack.c.h.b16 %v119
    %v362 = vunpack.c.l.b16 %v120
    %v363 = vunpack.c.h.b16 %v120
    %v364 = vunpack.c.l.b16 %v121
    %v365 = vunpack.c.h.b16 %v121
    %v366 = vunpack.c.l.b16 %v122
    %v367 = vunpack.c.h.b16 %v122
    %v368 = vunpack.c.l.b16 %v123
    %v369 = vunpack.c.h.b16 %v123
    %v370 = vunpack.c.l.b16 %v124
    %v371 = vunpack.c.h.b16 %v124
    %v372 = vunpack.c.l.b16 %v125
    %v373 = vunpack.c.h.b16 %v125
    %v374 = vunpack.c.l.b16 %v126
    %v375 = vunpack.c.h.b16 %v126
    %v376 = vunpack.c.l.b16 %v127
    %v377 = vunpack.c.h.b16 %v127
    %v378 = vunpack.c.l.b16 %v128
    %v379 = vunpack.c.h.b16 %v128
    %v380 = vunpack.c.l.b16 %v129
    %v381 = vunpack.c.h.b16 %v129
    %v382 = vunpack.c.l.b16 %v130
    %v383 = vunpack.c.h.b16 %v130
    %v384 = vunpack.c.l.b16 %v131
    %v385 = vunpack.c.h.b16 %v131
    %v386 = vunpack.c.l.b16 %v132
    %v387 = vunpack.c.h.b16 %v132
    %v388 = vunpack.c.l.b16 %v133
    %v389 = vunpack.c.h.b16 %v133
    %v390 = vunpack.c.l.b16 %v134
    %v391 = vunpack.c.h.b16 %v134
    %v392 = vunpack.c.l.b16 %v135
    %v393 = vunpack.c.h.b16 %v135
    %v394 = vunpack.c.l.b16 %v136
    %v395 = vunpack.c.h.b16 %v136
    %v396 = vunpack.c.l.b16 %v137
    %v397 = vunpack.c.h.b16 %v137
    %v398 = vunpack.c.l.b16 %v138
    %v399 = vunpack.c.h.b16 %v138
    %v400 = vunpack.c.l.b16 %v139
    %v401 = vunpack.c.h.b16 %v139
    %v402 = vunpack.c.l.b16 %v140
    %v403 = vunpack.c.h.b16 %v140
    %v404 = vunpack.c.l.b16 %v141
    %v405 = vunpack.c.h.b16 %v141
    %v406 = vunpack.c.l.b16 %v142
    %v407 = vunpack.c.h.b16 %v142
    %v408 = vunpack.c.l.b16 %v143
    %v409 = vunpack.c.h.b16 %v143
    %v410 = vunpack.c.l.b16 %v144
    %v411 = vunpack.c.h.b16 %v144
    %v412 = vunpack.c.l.b16 %v145
    %v413 = vunpack.c.h.b16 %v145
    %v414 = vunpack.c.l.b16 %v146
    %v415 = vunpack.c.h.b16 %v146
    %v416 = vunpack.c.l.b16 %v147
    %v417 = vunpack.c.h.b16 %v147
    %v418 = vunpack.c.l.b16 %v148
    %v419 = vunpack.c.h.b16 %v148
    %v420 = vunpack.c.l.b16 %v149
    %v421 = vunpack.c.h.b16 %v149
    %v422 = vunpack.c.l.b16 %v150
    %v423 = vunpack.c.h.b16 %v150
    %v424 = vunpack.c.l.b16 %v151
    %v425 = vunpack.c.h.b16 %v151
    %v426 = vunpack.c.l.b16 %v152
    %v427 = vunpack.c.h.b16 %v152
    %v428 = vunpack.c.l.b16 %v153
    %v429 = vunpack.c.h.b16 %v153
    %v430 = vunpack.c.l.b16 %v154
    %v431 = vunpack.c.h.b16 %v154
    %v432 = vunpack.c.l.b16 %v155
    %v433 = vunpack.c.h.b16 %v155
    %v434 = vunpack.c.l.b16 %v156
    %v435 = vunpack.c.h.b16 %v156
    %v436 = vunpack.c.l.b16 %v157
    %v437 = vunpack.c.h.b16 %v157
    %v438 = vunpack.c.l.b16 %v158
    %v439 = vunpack.c.h.b16 %v158
    %v440 = vunpack.c.l.b16 %v159
    %v441 = vunpack.c.h.b16 %v159
    %v442 = vunpack.c.l.b16 %v160
    %v443 = vunpack.c.h.b16 %v160
    %v444 = vunpack.c.l.b16 %v161
    %v445 = vunpack.c.h.b16 %v161
    %v446 = vunpack.c.l.b16 %v162
    %v447 = vunpack.c.h.b16 %v162
    %v448 = vunpack.c.l.b16 %v163
    %v449 = vunpack.c.h.b16 %v163
    %v450 = vunpack.c.l.b16 %v164
    %v451 = vunpack.c.h.b16 %v164
    %v452 = vunpack.c.l.b16 %v165
    %v453 = vunpack.c.h.b16 %v165
    %v454 = vunpack.c.l.b16 %v166
    %v455 = vunpack.c.h.b16 %v166
    %v456 = vunpack.c.l.b16 %v167
    %v457 = vunpack.c.h.b16 %v167
    %v458 = vunpack.c.l.b16 %v168
    %v459 = vunpack.c.h.b16 %v168
    %v460 = vunpack.c.l.b16 %v169
    %v461 = vunpack.c.h.b16 %v169
    %v462 = vunpack.c.l.b16 %v170
    %v463 = vunpack.c.h.b16 %v170
    %v464 = vunpack.c.l.b16 %v171
    %v465 = vunpack.c.h.b16 %v171
    %v466 = vunpack.c.l.b16 %v172
    %v467 = vunpack.c.h.b16 %v172
    %v468 = vunpack.c.l.b16 %v173
    %v469 = vunpack.c.h.b16 %v173
    %v470 = vunpack.c.l.b16 %v174
    %v471 = vunpack.c.h.b16 %v174
    %v472 = vunpack.c.l.b16 %v175
    %v473 = vunpack.c.h.b16 %v175
    %v474 = vunpack.c.l.b16 %v176
    %v475 = vunpack.c.h.b16 %v176
    %v476 = vunpack.c.l.b16 %v177
    %v477 = vunpack.c.h.b16 %v177
    %v478 = vunpack.c.l.b16 %v178
    %v479 = vunpack.c.h.b16 %v178
    %v480 = vunpack.c.l.b16 %v179
    %v481 = vunpack.c.h.b16 %v179
    %v482 = vunpack.c.l.b16 %v180
    %v483 = vunpack.c.h.b16 %v180
    %v484 = vunpack.c.l.b16 %v181
    %v485 = vunpack.c.h.b16 %v181
    %v486 = vunpack.c.l.b16 %v182
    %v487 = vunpack.c.h.b16 %v182
    %v488 = vunpack.c.l.b16 %v183
    %v489 = vunpack.c.h.b16 %v183
    %v490 = vunpack.c.l.b16 %v184
    %v491 = vunpack.c.h.b16 %v184
    %v492 = vunpack.c.l.b16 %v185
    %v493 = vunpack.c.h.b16 %v185
    %v494 = vunpack.c.l.b16 %v186
    %v495 = vunpack.c.h.b16 %v186
    %v496 = vunpack.c.l.b16 %v187
    %v497 = vunpack.c.h.b16 %v187
    %v498 = vunpack.c.l.b16 %v188
    %v499 = vunpack.c.h.b16 %v188
    %v500 = vunpack.c.l.b16 %v189
    %v501 = vunpack.c.h.b16 %v189
    %v502 = vunpack.c.l.b16 %v190
    %v503 = vunpack.c.h.b16 %v190
    %v504 = vunpack.c.l.b16 %v191
    %v505 = vunpack.c.h.b16 %v191
    %v506 = vunpack.c.l.b16 %v192
    %v507 = vunpack.c.h.b16 %v192
    %v508 = vunpack.c.l.b16 %v193
    %v509 = vunpack.c.h.b16 %v193
    %v510 = vunpack.c.l.b16 %v194
    %v511 = vunpack.c.h.b16 %v194
    %v512 = vunpack.c.l.b16 %v195
    %v513 = vunpack.c.h.b16 %v195
    %v514 = vunpack.c.l.b16 %v196
    %v515 = vunpack.c.h.b16 %v196
    %v516 = vunpack.c.l.b16 %v197
    %v517 = vunpack.c.h.b16 %v197
    %v518 = vunpack.c.l.b16 %v198
    %v519 = vunpack.c.h.b16 %v198
    %v520 = vunpack.c.l.b16 %v199
    %v521 = vunpack.c.h.b16 %v199
    %v522 = vunpack.c.l.b16 %v200
    %v523 = vunpack.c.h.b16 %v200
    %v524 = vunpack.c.l.b16 %v201
    %v525 = vunpack.c.h.b16 %v201
    %v526 = vunpack.c.l.b16 %v202
    %v527 = vunpack.c.h.b16 %v202
    %v528 = vunpack.c.l.b16 %v203
    %v529 = vunpack.c.h.b16 %v203
    %v530 = vunpack.c.l.b16 %v204
    %v531 = vunpack.c.h.b16 %v204
    %v532 = vunpack.c.l.b16 %v205
    %v533 = vunpack.c.h.b16 %v205
    %v534 = vunpack.c.l.b16 %v206
    %v535 = vunpack.c.h.b16 %v206
    %v536 = vunpack.c.l.b16 %v207
    %v537 = vunpack.c.h.b16 %v207
    %v538 = vunpack.c.l.b16 %v208
    %v539 = vunpack.c.h.b16 %v208
    %v540 = vunpack.c.l.b16 %v209
    %v541 = vunpack.c.h.b16 %v209
    %v542 = vunpack.c.l.b16 %v210
    %v543 = vunpack.c.h.b16 %v210
    %v544 = vunpack.c.l.b16 %v211
    %v545 = vunpack.c.h.b16 %v211
    %v546 = vunpack.c.l.b16 %v212
    %v547 = vunpack.c.h.b16 %v212
    %v548 = vunpack.c.l.b16 %v213
    %v549 = vunpack.c.h.b16 %v213
    %v550 = vunpack.c.l.b16 %v214
    %v551 = vunpack.c.h.b16 %v214
    %v552 = vunpack.c.l.b16 %v215
    %v553 = vunpack.c.h.b16 %v215
    %v554 = vunpack.c.l.b16 %v216
    %v555 = vunpack.c.h.b16 %v216
    %v556 = vunpack.c.l.b16 %v217
    %v557 = vunpack.c.h.b16 %v217
    %v558 = vunpack.c.l.b16 %v218
    %v559 = vunpack.c.h.b16 %v218
    %v560 = vunpack.c.l.b16 %v219
    %v561 = vunpack.c.h.b16 %v219
    %v562 = vunpack.c.l.b16 %v220
    %v563 = vunpack.c.h.b16 %v220
    %v564 = vunpack.c.l.b16 %v221
    %v565 = vunpack.c.h.b16 %v221
    %v566 = vunpack.c.l.b16 %v222
    %v567 = vunpack.c.h.b16 %v222
    %v568 = vunpack.c.l.b16 %v223
    %v569 = vunpack.c.h.b16 %v223
    %v570 = vunpack.c.l.b16 %v224
    %v571 = vunpack.c.h.b16 %v224
    %v572 = vunpack.c.l.b16 %v225
    %v573 = vunpack.c.h.b16 %v225
    %v574 = vpack.c.b16 %v352, %v350
    %v575 = vpack.c.b16 %v353, %v351
    %v576 = vpack.c.b16 %v356, %v354
    %v577 = vpack.c.b16 %v357, %v355
    %v578 = vpack.c.b16 %v360, %v358
    %v579 = vpack.c.b16 %v361, %v359
    %v580 = vpack.c.b16 %v364, %v362
    %v581 = vpack.c.b16 %v365, %v363
    %v582 = vpack.c.b16 %v368, %v366
    %v583 = vpack.c.b16 %v369, %v367
    %v584 = vpack.c.b16 %v372, %v370
    %v585 = vpack.c.b16 %v373, %v371
    %v586 = vpack.c.b16 %v376, %v374
    %v587 = vpack.c.b16 %v377, %v375
    %v588 = vpack.c.b16 %v380, %v378
    %v589 = vpack.c.b16 %v381, %v379
    %v590 = vpack.c.b16 %v384, %v382
    %v591 = vpack.c.b16 %v385, %v383
    %v592 = vpack.c.b16 %v388, %v386
    %v593 = vpack.c.b16 %v389, %v387
    %v594 = vpack.c.b16 %v392, %v390
    %v595 = vpack.c.b16 %v393, %v391
    %v596 = vpack.c.b16 %v396, %v394
    %v597 = vpack.c.b16 %v397, %v395
    %v598 = vpack.c.b16 %v400, %v398
    %v599 = vpack.c.b16 %v401, %v399
    %v600 = vpack.c.b16 %v404, %v402
    %v601 = vpack.c.b16 %v405, %v403
    %v602 = vpack.c.b16 %v408, %v406
    %v603 = vpack.c.b16 %v409, %v407
    %v604 = vpack.c.b16 %v412, %v410
    %v605 = vpack.c.b16 %v413, %v411
    %v606 = vpack.c.b16 %v416, %v414
    %v607 = vpack.c.b16 %v417, %v415
    %v608 = vpack.c.b16 %v420, %v418
    %v609 = vpack.c.b16 %v421, %v419
    %v610 = vpack.c.b16 %v424, %v422
    %v611 = vpack.c.b16 %v425, %v423
    %v612 = vpack.c.b16 %v428, %v426
    %v613 = vpack.c.b16 %v429, %v427
    %v614 = vpack.c.b16 %v432, %v430
    %v615 = vpack.c.b16 %v433, %v431
    %v616 = vpack.c.b16 %v436, %v434
    %v617 = vpack.c.b16 %v437, %v435
    %v618 = vpack.c.b16 %v440, %v438
    %v619 = vpack.c.b16 %v441, %v439
    %v620 = vpack.c.b16 %v444, %v442
    %v621 = vpack.c.b16 %v445, %v443
    %v622 = vpack.c.b16 %v448, %v446
    %v623 = vpack.c.b16 %v449, %v447
    %v624 = vpack.c.b16 %v452, %v450
    %v625 = vpack.c.b16 %v453, %v451
    %v626 = vpack.c.b16 %v456, %v454
    %v627 = vpack.c.b16 %v457, %v455
    %v628 = vpack.c.b16 %v460, %v458
    %v629 = vpack.c.b16 %v461, %v459
    %v630 = vpack.c.b16 %v464, %v462
    %v631 = vpack.c.b16 %v465, %v463
    %v632 = vpack.c.b16 %v468, %v466
    %v633 = vpack.c.b16 %v469, %v467
    %v634 = vpack.c.b16 %v472, %v470
    %v635 = vpack.c.b16 %v473, %v471
    %v636 = vpack.c.b16 %v476, %v474
    %v637 = vpack.c.b16 %v477, %v475
    %v638 = vpack.c.b16 %v480, %v478
    %v639 = vpack.c.b16 %v481, %v479
    %v640 = vpack.c.b16 %v484, %v482
    %v641 = vpack.c.b16 %v485, %v483
    %v642 = vpack.c.b16 %v488, %v486
    %v643 = vpack.c.b16 %v489, %v487
    %v644 = vpack.c.b16 %v492, %v490
    %v645 = vpack.c.b16 %v493, %v491
    %v646 = vpack.c.b16 %v496, %v494
    %v647 = vpack.c.b16 %v497, %v495
    %v648 = vpack.c.b16 %v500, %v498
    %v649 = vpack.c.b16 %v501, %v499
    %v650 = vpack.c.b16 %v504, %v502
    %v651 = vpack.c.b16 %v505, %v503
    %v652 = vpack.c.b16 %v508, %v506
    %v653 = vpack.c.b16 %v509, %v507
    %v654 = vpack.c.b16 %v512, %v510
    %v655 = vpack.c.b16 %v513, %v511
    %v656 = vpack.c.b16 %v516, %v514
    %v657 = vpack.c.b16 %v517, %v515
    %v658 = vpack.c.b16 %v520, %v518
    %v659 = vpack.c.b16 %v521, %v519
    %v660 = vpack.c.b16 %v524, %v522
    %v661 = vpack.c.b16 %v525, %v523
    %v662 = vpack.c.b16 %v528, %v526
    %v663 = vpack.c.b16 %v529, %v527
    %v664 = vpack.c.b16 %v532, %v530
    %v665 = vpack.c.b16 %v533, %v531
    %v666 = vpack.c.b16 %v536, %v534
    %v667 = vpack.c.b16 %v537, %v535
    %v668 = vpack.c.b16 %v540, %v538
    %v669 = vpack.c.b16 %v541, %v539
    %v670 = vpack.c.b16 %v544, %v542
    %v671 = vpack.c.b16 %v545, %v543
    %v672 = vpack.c.b16 %v548, %v546
    %v673 = vpack.c.b16 %v549, %v547
    %v674 = vpack.c.b16 %v552, %v550
    %v675 = vpack.c.b16 %v553, %v551
    %v676 = vpack.c.b16 %v556, %v554
    %v677 = vpack.c.b16 %v557, %v555
    %v678 = vpack.c.b16 %v560, %v558
    %v679 = vpack.c.b16 %v561, %v559
    %v680 = vpack.c.b16 %v564, %v562
    %v681 = vpack.c.b16 %v565, %v563
    %v682 = vpack.c.b16 %v568, %v566
    %v683 = vpack.c.b16 %v569, %v567
    %v684 = vpack.c.b16 %v572, %v570
    %v685 = vpack.c.b16 %v573, %v571
    %798 = vmatprep.subr.bf16.mxu0 %v575
    %799 = vmatpush1.bf16.msra.mxu0 %v574
    %800 = vmatprep.subr.bf16.mxu0 %v577
    %801 = vmatpush1.bf16.msra.mxu0 %v576
    %802 = vmatprep.subr.bf16.mxu0 %v579
    %803 = vmatpush1.bf16.msra.mxu0 %v578
    %804 = vmatprep.subr.bf16.mxu0 %v581
    %805 = vmatpush1.bf16.msra.mxu0 %v580
    %806 = vmatprep.subr.bf16.mxu0 %v583
    %807 = vmatpush1.bf16.msra.mxu0 %v582
    %808 = vmatprep.subr.bf16.mxu0 %v585
    %809 = vmatpush1.bf16.msra.mxu0 %v584
    %810 = vmatprep.subr.bf16.mxu0 %v587
    %811 = vmatpush1.bf16.msra.mxu0 %v586
    %812 = vmatprep.subr.bf16.mxu0 %v589
    %813 = vmatpush1.bf16.msra.mxu0 %v588
    %814 = vmatprep.subr.bf16.mxu0 %v591
    %815 = vmatpush1.bf16.msra.mxu0 %v590
    %816 = vmatprep.subr.bf16.mxu0 %v593
    %817 = vmatpush1.bf16.msra.mxu0 %v592
    %818 = vmatprep.subr.bf16.mxu0 %v595
    %819 = vmatpush1.bf16.msra.mxu0 %v594
    %820 = vmatprep.subr.bf16.mxu0 %v597
    %821 = vmatpush1.bf16.msra.mxu0 %v596
    %822 = vmatprep.subr.bf16.mxu0 %v599
    %823 = vmatpush1.bf16.msra.mxu0 %v598
    %824 = vmatprep.subr.bf16.mxu0 %v601
    %825 = vmatpush1.bf16.msra.mxu0 %v600
    %826 = vmatprep.subr.bf16.mxu0 %v603
    %827 = vmatpush1.bf16.msra.mxu0 %v602
    %828 = vmatprep.subr.bf16.mxu0 %v605
    %829 = vmatpush1.bf16.msra.mxu0 %v604
    %830 = vmatprep.mubr.bf16.mxu0 %v108
    %831 = vmatmul.mubr.bf16.gmra.mrb[0].mxu0 %v107
    %v832 = vpop.f32.mrb[0].mxu0
    %v833 = vadd.f32 %v231, %v832
    %v834 = vpop.f32.mrb[0].mxu0
    %v835 = vadd.f32 %v235, %v834
    %v836 = vpop.f32.mrb[0].mxu0
    %v837 = vpop.f32.mrb[0].mxu0
    %838 = vdwg.mxu0
    %839 = vmatprep.subr.bf16.mxu0 %v607
    %840 = vmatpush1.bf16.msra.mxu0 %v606
    %841 = vmatprep.subr.bf16.mxu0 %v609
    %842 = vmatpush1.bf16.msra.mxu0 %v608
    %843 = vmatprep.subr.bf16.mxu0 %v611
    %844 = vmatpush1.bf16.msra.mxu0 %v610
    %845 = vmatprep.subr.bf16.mxu0 %v613
    %846 = vmatpush1.bf16.msra.mxu0 %v612
    %847 = vmatprep.subr.bf16.mxu0 %v615
    %848 = vmatpush1.bf16.msra.mxu0 %v614
    %849 = vmatprep.subr.bf16.mxu0 %v617
    %850 = vmatpush1.bf16.msra.mxu0 %v616
    %851 = vmatprep.subr.bf16.mxu0 %v619
    %852 = vmatpush1.bf16.msra.mxu0 %v618
    %853 = vmatprep.subr.bf16.mxu0 %v621
    %854 = vmatpush1.bf16.msra.mxu0 %v620
    %855 = vmatprep.subr.bf16.mxu0 %v623
    %856 = vmatpush1.bf16.msra.mxu0 %v622
    %857 = vmatprep.subr.bf16.mxu0 %v625
    %858 = vmatpush1.bf16.msra.mxu0 %v624
    %859 = vmatprep.subr.bf16.mxu0 %v627
    %860 = vmatpush1.bf16.msra.mxu0 %v626
    %861 = vmatprep.subr.bf16.mxu0 %v629
    %862 = vmatpush1.bf16.msra.mxu0 %v628
    %863 = vmatprep.subr.bf16.mxu0 %v631
    %864 = vmatpush1.bf16.msra.mxu0 %v630
    %865 = vmatprep.subr.bf16.mxu0 %v633
    %866 = vmatpush1.bf16.msra.mxu0 %v632
    %867 = vmatprep.subr.bf16.mxu0 %v635
    %868 = vmatpush1.bf16.msra.mxu0 %v634
    %869 = vmatprep.subr.bf16.mxu0 %v637
    %870 = vmatpush1.bf16.msra.mxu0 %v636
    %871 = vmatprep.mubr.bf16.mxu0 %v110
    %872 = vmatmul.mubr.bf16.gmra.mrb[0].mxu0 %v109
    %v873 = vpop.f32.mrb[0].mxu0
    %v874 = vadd.f32 %v833, %v873
    %v875 = vpop.f32.mrb[0].mxu0
    %v876 = vadd.f32 %v835, %v875
    %v877 = vpop.f32.mrb[0].mxu0
    %v878 = vpop.f32.mrb[0].mxu0
    %879 = vdwg.mxu0
    %880 = vmatprep.subr.bf16.mxu0 %v639
    %881 = vmatpush1.bf16.msra.mxu0 %v638
    %882 = vmatprep.subr.bf16.mxu0 %v641
    %883 = vmatpush1.bf16.msra.mxu0 %v640
    %884 = vmatprep.subr.bf16.mxu0 %v643
    %885 = vmatpush1.bf16.msra.mxu0 %v642
    %886 = vmatprep.subr.bf16.mxu0 %v645
    %887 = vmatpush1.bf16.msra.mxu0 %v644
    %888 = vmatprep.subr.bf16.mxu0 %v647
    %889 = vmatpush1.bf16.msra.mxu0 %v646
    %890 = vmatprep.subr.bf16.mxu0 %v649
    %891 = vmatpush1.bf16.msra.mxu0 %v648
    %892 = vmatprep.subr.bf16.mxu0 %v651
    %893 = vmatpush1.bf16.msra.mxu0 %v650
    %894 = vmatprep.subr.bf16.mxu0 %v653
    %895 = vmatpush1.bf16.msra.mxu0 %v652
    %896 = vmatprep.subr.bf16.mxu0 %v655
    %897 = vmatpush1.bf16.msra.mxu0 %v654
    %898 = vmatprep.subr.bf16.mxu0 %v657
    %899 = vmatpush1.bf16.msra.mxu0 %v656
    %900 = vmatprep.subr.bf16.mxu0 %v659
    %901 = vmatpush1.bf16.msra.mxu0 %v658
    %902 = vmatprep.subr.bf16.mxu0 %v661
    %903 = vmatpush1.bf16.msra.mxu0 %v660
    %904 = vmatprep.subr.bf16.mxu0 %v663
    %905 = vmatpush1.bf16.msra.mxu0 %v662
    %906 = vmatprep.subr.bf16.mxu0 %v665
    %907 = vmatpush1.bf16.msra.mxu0 %v664
    %908 = vmatprep.subr.bf16.mxu0 %v667
    %909 = vmatpush1.bf16.msra.mxu0 %v666
    %910 = vmatprep.subr.bf16.mxu0 %v669
    %911 = vmatpush1.bf16.msra.mxu0 %v668
    %912 = vmatprep.mubr.bf16.mxu0 %v112
    %913 = vmatmul.mubr.bf16.gmra.mrb[0].mxu0 %v111
    %v914 = vpop.f32.mrb[0].mxu0
    %v915 = vadd.f32 %v874, %v914
    %v916 = vpop.f32.mrb[0].mxu0
    %v917 = vadd.f32 %v876, %v916
    %v918 = vpop.f32.mrb[0].mxu0
    %v919 = vpop.f32.mrb[0].mxu0
    %920 = vdwg.mxu0
    %921 = vmatprep.subr.bf16.mxu0 %v671
    %922 = vmatpush1.bf16.msra.mxu0 %v670
    %923 = vmatprep.subr.bf16.mxu0 %v673
    %924 = vmatpush1.bf16.msra.mxu0 %v672
    %925 = vmatprep.subr.bf16.mxu0 %v675
    %926 = vmatpush1.bf16.msra.mxu0 %v674
    %927 = vmatprep.subr.bf16.mxu0 %v677
    %928 = vmatpush1.bf16.msra.mxu0 %v676
    %929 = vmatprep.subr.bf16.mxu0 %v679
    %930 = vmatpush1.bf16.msra.mxu0 %v678
    %931 = vmatprep.subr.bf16.mxu0 %v681
    %932 = vmatpush1.bf16.msra.mxu0 %v680
    %933 = vmatprep.subr.bf16.mxu0 %v683
    %934 = vmatpush1.bf16.msra.mxu0 %v682
    %935 = vmatprep.subr.bf16.mxu0 %v685
    %936 = vmatpush1.bf16.msra.mxu0 %v684
    %937 = vmatprep.subr.bf16.mxu0 0
    %938 = vmatpush1.bf16.msra.mxu0 0
    %939 = vmatprep.subr.bf16.mxu0 0
    %940 = vmatpush1.bf16.msra.mxu0 0
    %941 = vmatprep.subr.bf16.mxu0 0
    %942 = vmatpush1.bf16.msra.mxu0 0
    %943 = vmatprep.subr.bf16.mxu0 0
    %944 = vmatpush1.bf16.msra.mxu0 0
    %945 = vmatprep.subr.bf16.mxu0 0
    %946 = vmatpush1.bf16.msra.mxu0 0
    %947 = vmatprep.subr.bf16.mxu0 0
    %948 = vmatpush1.bf16.msra.mxu0 0
    %949 = vmatprep.subr.bf16.mxu0 0
    %950 = vmatpush1.bf16.msra.mxu0 0
    %951 = vmatprep.subr.bf16.mxu0 0
    %952 = vmatpush1.bf16.msra.mxu0 0
    %953 = vmatprep.mubr.bf16.mxu0 0
    %954 = vmatmul.mubr.bf16.gmra.mrb[0].mxu0 %v113
    %v955 = vpop.f32.mrb[0].mxu0
    %v956 = vadd.f32 %v915, %v955
    %v957 = vpop.f32.mrb[0].mxu0
    %v958 = vadd.f32 %v917, %v957
    %v959 = vpop.f32.mrb[0].mxu0
    %v960 = vpop.f32.mrb[0].mxu0
    %961 = vdwg.mxu0
    %v962 = vmax.f32 %v956, 0.0
    %v963 = vmax.f32 %v958, 0.0
    %v964 = vpack.c.bf16 %v962, %v962
    %v965 = vpack.c.bf16 %v963, %v963
    %v966 = vld [vmem:[#allocation7] sm:$0xf]
    %v967 = vld [vmem:[#allocation7 + $0x4] sm:$0xf]
    %v968 = vld [vmem:[#allocation7 + $0x8] sm:$0xf]
    %v969 = vld [vmem:[#allocation7 + $0xc] sm:$0xf]
    %v970 = vld [vmem:[#allocation7 + $0x10] sm:$0xf]
    %v971 = vld [vmem:[#allocation7 + $0x14] sm:$0xf]
    %v972 = vld [vmem:[#allocation7 + $0x18] sm:$0xf]
    %v973 = vld [vmem:[#allocation7 + $0x1c] sm:$0xf]
    %v974 = vld [vmem:[#allocation7 + $0x20] sm:$0xf]
    %v975 = vld [vmem:[#allocation7 + $0x24] sm:$0xf]
    %v976 = vld [vmem:[#allocation7 + $0x28] sm:$0xf]
    %v977 = vld [vmem:[#allocation7 + $0x2c] sm:$0xf]
    %v978 = vld [vmem:[#allocation7 + $0x30] sm:$0xf]
    %v979 = vld [vmem:[#allocation7 + $0x34] sm:$0xf]
    %v980 = vld [vmem:[#allocation7 + $0x38] sm:$0xf]
    %v981 = vld [vmem:[#allocation7 + $0x3c] sm:$0xf]
    %v982 = vld [vmem:[#allocation7 + $0x40] sm:$0xf]
    %v983 = vld [vmem:[#allocation7 + $0x44] sm:$0xf]
    %v984 = vld [vmem:[#allocation7 + $0x48] sm:$0xf]
    %v985 = vld [vmem:[#allocation7 + $0x4c] sm:$0xf]
    %v986 = vld [vmem:[#allocation7 + $0x50] sm:$0xf]
    %v987 = vld [vmem:[#allocation7 + $0x54] sm:$0xf]
    %v988 = vld [vmem:[#allocation7 + $0x58] sm:$0xf]
    %v989 = vld [vmem:[#allocation7 + $0x5c] sm:$0xf]
    %v990 = vld [vmem:[#allocation7 + $0x60] sm:$0xf]
    %v991 = vld [vmem:[#allocation7 + $0x64] sm:$0xf]
    %v992 = vld [vmem:[#allocation7 + $0x68] sm:$0xf]
    %v993 = vld [vmem:[#allocation7 + $0x6c] sm:$0xf]
    %v994 = vld [vmem:[#allocation7 + $0x70] sm:$0xf]
    %v995 = vld [vmem:[#allocation7 + $0x74] sm:$0xf]
    %v996 = vld [vmem:[#allocation7 + $0x78] sm:$0xf]
    %v997 = vld [vmem:[#allocation7 + $0x7c] sm:$0xf]
    %v998 = vld [vmem:[%s4] sm:$0x1]
    %v1000 = vlaneseq
    %v1001 = vshrl.u32 %v1000, 7
    %v1002 = vsub.s32 0, %v1001
    %v1003 = vrot.slane %v998, %v1002
    %v1037 = vunpack.c.l.b16 %v966
    %v1038 = vunpack.c.l.b16 %v967
    %v1039 = vunpack.c.l.b16 %v968
    %v1040 = vunpack.c.l.b16 %v969
    %v1041 = vunpack.c.l.b16 %v970
    %v1042 = vunpack.c.l.b16 %v971
    %v1043 = vunpack.c.l.b16 %v972
    %v1044 = vunpack.c.l.b16 %v973
    %v1045 = vunpack.c.l.b16 %v974
    %v1046 = vunpack.c.l.b16 %v975
    %v1047 = vunpack.c.l.b16 %v976
    %v1048 = vunpack.c.l.b16 %v977
    %v1049 = vunpack.c.l.b16 %v978
    %v1050 = vunpack.c.l.b16 %v979
    %v1051 = vunpack.c.l.b16 %v980
    %v1052 = vunpack.c.l.b16 %v981
    %v1053 = vunpack.c.l.b16 %v982
    %v1054 = vunpack.c.l.b16 %v983
    %v1055 = vunpack.c.l.b16 %v984
    %v1056 = vunpack.c.l.b16 %v985
    %v1057 = vunpack.c.l.b16 %v986
    %v1058 = vunpack.c.l.b16 %v987
    %v1059 = vunpack.c.l.b16 %v988
    %v1060 = vunpack.c.l.b16 %v989
    %v1061 = vunpack.c.l.b16 %v990
    %v1062 = vunpack.c.l.b16 %v991
    %v1063 = vunpack.c.l.b16 %v992
    %v1064 = vunpack.c.l.b16 %v993
    %v1065 = vunpack.c.l.b16 %v994
    %v1066 = vunpack.c.l.b16 %v995
    %v1067 = vunpack.c.l.b16 %v996
    %v1068 = vunpack.c.l.b16 %v997
    %v1069 = vpack.c.b16 %v1038, %v1037
    %v1070 = vpack.c.b16 %v1040, %v1039
    %v1071 = vpack.c.b16 %v1042, %v1041
    %v1072 = vpack.c.b16 %v1044, %v1043
    %v1073 = vpack.c.b16 %v1046, %v1045
    %v1074 = vpack.c.b16 %v1048, %v1047
    %v1075 = vpack.c.b16 %v1050, %v1049
    %v1076 = vpack.c.b16 %v1052, %v1051
    %v1077 = vpack.c.b16 %v1054, %v1053
    %v1078 = vpack.c.b16 %v1056, %v1055
    %v1079 = vpack.c.b16 %v1058, %v1057
    %v1080 = vpack.c.b16 %v1060, %v1059
    %v1081 = vpack.c.b16 %v1062, %v1061
    %v1082 = vpack.c.b16 %v1064, %v1063
    %v1083 = vpack.c.b16 %v1066, %v1065
    %v1084 = vpack.c.b16 %v1068, %v1067
    %1101 = vmatprep.subr.bf16.mxu0 0
    %1102 = vmatpush1.bf16.msra.mxu0 %v1069
    %1103 = vmatprep.subr.bf16.mxu0 0
    %1104 = vmatpush1.bf16.msra.mxu0 %v1070
    %1105 = vmatprep.subr.bf16.mxu0 0
    %1106 = vmatpush1.bf16.msra.mxu0 %v1071
    %1107 = vmatprep.subr.bf16.mxu0 0
    %1108 = vmatpush1.bf16.msra.mxu0 %v1072
    %1109 = vmatprep.subr.bf16.mxu0 0
    %1110 = vmatpush1.bf16.msra.mxu0 %v1073
    %1111 = vmatprep.subr.bf16.mxu0 0
    %1112 = vmatpush1.bf16.msra.mxu0 %v1074
    %1113 = vmatprep.subr.bf16.mxu0 0
    %1114 = vmatpush1.bf16.msra.mxu0 %v1075
    %1115 = vmatprep.subr.bf16.mxu0 0
    %1116 = vmatpush1.bf16.msra.mxu0 %v1076
    %1117 = vmatprep.subr.bf16.mxu0 0
    %1118 = vmatpush1.bf16.msra.mxu0 %v1077
    %1119 = vmatprep.subr.bf16.mxu0 0
    %1120 = vmatpush1.bf16.msra.mxu0 %v1078
    %1121 = vmatprep.subr.bf16.mxu0 0
    %1122 = vmatpush1.bf16.msra.mxu0 %v1079
    %1123 = vmatprep.subr.bf16.mxu0 0
    %1124 = vmatpush1.bf16.msra.mxu0 %v1080
    %1125 = vmatprep.subr.bf16.mxu0 0
    %1126 = vmatpush1.bf16.msra.mxu0 %v1081
    %1127 = vmatprep.subr.bf16.mxu0 0
    %1128 = vmatpush1.bf16.msra.mxu0 %v1082
    %1129 = vmatprep.subr.bf16.mxu0 0
    %1130 = vmatpush1.bf16.msra.mxu0 %v1083
    %1131 = vmatprep.subr.bf16.mxu0 0
    %1132 = vmatpush1.bf16.msra.mxu0 %v1084
    %1133 = vmatprep.mubr.bf16.mxu0 %v965
    %1134 = vmatmul.mubr.bf16.gmra.mrb[0].mxu0 %v964
    %v1135 = vpop.f32.mrb[0].mxu0
    %v1136 = vadd.f32 %v1003, %v1135
    %v1137 = vpop.f32.mrb[0].mxu0
    %v1138 = vpop.f32.mrb[0].mxu0
    %v1139 = vpop.f32.mrb[0].mxu0
    %1140 = vdwg.mxu0
    %v1141 = vmax.f32 %v1136, 0.0
    %v1142 = vpack.c.bf16 %v1141, %v1141
    %v1143 = vld [vmem:[#allocation8] sm:$0xf]
    %v1144 = vld [vmem:[#allocation8 + $0x4] sm:$0xf]
    %v1145 = vld [vmem:[#allocation8 + $0x8] sm:$0xf]
    %v1146 = vld [vmem:[#allocation8 + $0xc] sm:$0xf]
    %v1147 = vld [vmem:[#allocation8 + $0x10] sm:$0xf]
    %v1148 = vld [vmem:[#allocation8 + $0x14] sm:$0xf]
    %v1149 = vld [vmem:[#allocation8 + $0x18] sm:$0xf]
    %v1150 = vld [vmem:[#allocation8 + $0x1c] sm:$0xf]
    %v1151 = vld [vmem:[#allocation8 + $0x20] sm:$0xf]
    %v1152 = vld [vmem:[#allocation8 + $0x24] sm:$0xf]
    %v1153 = vld [vmem:[#allocation8 + $0x28] sm:$0xf]
    %v1154 = vld [vmem:[#allocation8 + $0x2c] sm:$0xf]
    %v1155 = vld [vmem:[#allocation8 + $0x30] sm:$0xf]
    %v1156 = vld [vmem:[#allocation8 + $0x34] sm:$0xf]
    %v1157 = vld [vmem:[#allocation8 + $0x38] sm:$0xf]
    %v1158 = vld [vmem:[#allocation8 + $0x3c] sm:$0xf]
    %v1159 = vld [vmem:[%s6] sm:$0x1]
    %v1161 = vlaneseq
    %v1162 = vshrl.u32 %v1161, 7
    %v1163 = vsub.s32 0, %v1162
    %v1164 = vrot.slane %v1159, %v1163
    %v1182 = vunpack.c.l.b16 %v1143
    %v1183 = vunpack.c.l.b16 %v1144
    %v1184 = vunpack.c.l.b16 %v1145
    %v1185 = vunpack.c.l.b16 %v1146
    %v1186 = vunpack.c.l.b16 %v1147
    %v1187 = vunpack.c.l.b16 %v1148
    %v1188 = vunpack.c.l.b16 %v1149
    %v1189 = vunpack.c.l.b16 %v1150
    %v1190 = vunpack.c.l.b16 %v1151
    %v1191 = vunpack.c.l.b16 %v1152
    %v1192 = vunpack.c.l.b16 %v1153
    %v1193 = vunpack.c.l.b16 %v1154
    %v1194 = vunpack.c.l.b16 %v1155
    %v1195 = vunpack.c.l.b16 %v1156
    %v1196 = vunpack.c.l.b16 %v1157
    %v1197 = vunpack.c.l.b16 %v1158
    %v1198 = vpack.c.b16 %v1183, %v1182
    %v1199 = vpack.c.b16 %v1185, %v1184
    %v1200 = vpack.c.b16 %v1187, %v1186
    %v1201 = vpack.c.b16 %v1189, %v1188
    %v1202 = vpack.c.b16 %v1191, %v1190
    %v1203 = vpack.c.b16 %v1193, %v1192
    %v1204 = vpack.c.b16 %v1195, %v1194
    %v1205 = vpack.c.b16 %v1197, %v1196
    %1214 = vmatprep.subr.bf16.mxu0 0
    %1215 = vmatpush1.bf16.msra.mxu0 %v1198
    %1216 = vmatprep.subr.bf16.mxu0 0
    %1217 = vmatpush1.bf16.msra.mxu0 %v1199
    %1218 = vmatprep.subr.bf16.mxu0 0
    %1219 = vmatpush1.bf16.msra.mxu0 %v1200
    %1220 = vmatprep.subr.bf16.mxu0 0
    %1221 = vmatpush1.bf16.msra.mxu0 %v1201
    %1222 = vmatprep.subr.bf16.mxu0 0
    %1223 = vmatpush1.bf16.msra.mxu0 %v1202
    %1224 = vmatprep.subr.bf16.mxu0 0
    %1225 = vmatpush1.bf16.msra.mxu0 %v1203
    %1226 = vmatprep.subr.bf16.mxu0 0
    %1227 = vmatpush1.bf16.msra.mxu0 %v1204
    %1228 = vmatprep.subr.bf16.mxu0 0
    %1229 = vmatpush1.bf16.msra.mxu0 %v1205
    %1230 = vmatprep.subr.bf16.mxu0 0
    %1231 = vmatpush1.bf16.msra.mxu0 0
    %1232 = vmatprep.subr.bf16.mxu0 0
    %1233 = vmatpush1.bf16.msra.mxu0 0
    %1234 = vmatprep.subr.bf16.mxu0 0
    %1235 = vmatpush1.bf16.msra.mxu0 0
    %1236 = vmatprep.subr.bf16.mxu0 0
    %1237 = vmatpush1.bf16.msra.mxu0 0
    %1238 = vmatprep.subr.bf16.mxu0 0
    %1239 = vmatpush1.bf16.msra.mxu0 0
    %1240 = vmatprep.subr.bf16.mxu0 0
    %1241 = vmatpush1.bf16.msra.mxu0 0
    %1242 = vmatprep.subr.bf16.mxu0 0
    %1243 = vmatpush1.bf16.msra.mxu0 0
    %1244 = vmatprep.subr.bf16.mxu0 0
    %1245 = vmatpush1.bf16.msra.mxu0 0
    %1246 = vmatprep.mubr.bf16.mxu0 0
    %1247 = vmatmul.mubr.bf16.gmra.mrb[0].mxu0 %v1142
    %v1248 = vpop.f32.mrb[0].mxu0
    %v1249 = vadd.f32 %v1164, %v1248
    %v1250 = vpop.f32.mrb[0].mxu0
    %v1251 = vpop.f32.mrb[0].mxu0
    %v1252 = vpop.f32.mrb[0].mxu0
    %1253 = vdwg.mxu0
    %v1254 = vmax.f32 %v1249, 0.0
    %v1255 = vpack.c.bf16 %v1254, %v1254
    %v1256 = vld [vmem:[#allocation10] sm:$0xf]
    %v1257 = vld [vmem:[#allocation10 + $0x4] sm:$0xf]
    %v1258 = vld [vmem:[#allocation10 + $0x8] sm:$0xf]
    %v1259 = vld [vmem:[#allocation10 + $0xc] sm:$0xf]
    %v1260 = vld [vmem:[#allocation10 + $0x10] sm:$0xf]
    %v1261 = vld [vmem:[#allocation10 + $0x14] sm:$0xf]
    %v1262 = vld [vmem:[#allocation10 + $0x18] sm:$0xf]
    %v1263 = vld [vmem:[#allocation10 + $0x1c] sm:$0xf]
    %v1264 = vld [vmem:[#allocation10 + $0x20] sm:$0xf]
    %v1265 = vld [vmem:[#allocation10 + $0x24] sm:$0xf]
    %v1266 = vld [vmem:[#allocation10 + $0x28] sm:$0xf]
    %v1267 = vld [vmem:[#allocation10 + $0x2c] sm:$0xf]
    %v1268 = vld [vmem:[#allocation10 + $0x30] sm:$0xf]
    %v1269 = vld [vmem:[#allocation10 + $0x34] sm:$0xf]
    %v1270 = vld [vmem:[#allocation10 + $0x38] sm:$0xf]
    %v1271 = vld [vmem:[#allocation10 + $0x3c] sm:$0xf]
    %v1272 = vld [vmem:[%s8] sm:$0x1]
    %v1274 = vlaneseq
    %v1275 = vshrl.u32 %v1274, 7
    %v1276 = vsub.s32 0, %v1275
    %v1277 = vrot.slane %v1272, %v1276
    %v1295 = vunpack.c.l.b16 %v1256
    %v1296 = vunpack.c.l.b16 %v1257
    %v1297 = vunpack.c.l.b16 %v1258
    %v1298 = vunpack.c.l.b16 %v1259
    %v1299 = vunpack.c.l.b16 %v1260
    %v1300 = vunpack.c.l.b16 %v1261
    %v1301 = vunpack.c.l.b16 %v1262
    %v1302 = vunpack.c.l.b16 %v1263
    %v1303 = vunpack.c.l.b16 %v1264
    %v1304 = vunpack.c.l.b16 %v1265
    %v1305 = vunpack.c.l.b16 %v1266
    %v1306 = vunpack.c.l.b16 %v1267
    %v1307 = vunpack.c.l.b16 %v1268
    %v1308 = vunpack.c.l.b16 %v1269
    %v1309 = vunpack.c.l.b16 %v1270
    %v1310 = vunpack.c.l.b16 %v1271
    %v1311 = vpack.c.b16 %v1296, %v1295
    %v1312 = vpack.c.b16 %v1298, %v1297
    %v1313 = vpack.c.b16 %v1300, %v1299
    %v1314 = vpack.c.b16 %v1302, %v1301
    %v1315 = vpack.c.b16 %v1304, %v1303
    %v1316 = vpack.c.b16 %v1306, %v1305
    %v1317 = vpack.c.b16 %v1308, %v1307
    %v1318 = vpack.c.b16 %v1310, %v1309
    %1327 = vmatprep.subr.bf16.mxu0 0
    %1328 = vmatpush1.bf16.msra.mxu0 %v1311
    %1329 = vmatprep.subr.bf16.mxu0 0
    %1330 = vmatpush1.bf16.msra.mxu0 %v1312
    %1331 = vmatprep.subr.bf16.mxu0 0
    %1332 = vmatpush1.bf16.msra.mxu0 %v1313
    %1333 = vmatprep.subr.bf16.mxu0 0
    %1334 = vmatpush1.bf16.msra.mxu0 %v1314
    %1335 = vmatprep.subr.bf16.mxu0 0
    %1336 = vmatpush1.bf16.msra.mxu0 %v1315
    %1337 = vmatprep.subr.bf16.mxu0 0
    %1338 = vmatpush1.bf16.msra.mxu0 %v1316
    %1339 = vmatprep.subr.bf16.mxu0 0
    %1340 = vmatpush1.bf16.msra.mxu0 %v1317
    %1341 = vmatprep.subr.bf16.mxu0 0
    %1342 = vmatpush1.bf16.msra.mxu0 %v1318
    %1343 = vmatprep.subr.bf16.mxu0 0
    %1344 = vmatpush1.bf16.msra.mxu0 0
    %1345 = vmatprep.subr.bf16.mxu0 0
    %1346 = vmatpush1.bf16.msra.mxu0 0
    %1347 = vmatprep.subr.bf16.mxu0 0
    %1348 = vmatpush1.bf16.msra.mxu0 0
    %1349 = vmatprep.subr.bf16.mxu0 0
    %1350 = vmatpush1.bf16.msra.mxu0 0
    %1351 = vmatprep.subr.bf16.mxu0 0
    %1352 = vmatpush1.bf16.msra.mxu0 0
    %1353 = vmatprep.subr.bf16.mxu0 0
    %1354 = vmatpush1.bf16.msra.mxu0 0
    %1355 = vmatprep.subr.bf16.mxu0 0
    %1356 = vmatpush1.bf16.msra.mxu0 0
    %1357 = vmatprep.subr.bf16.mxu0 0
    %1358 = vmatpush1.bf16.msra.mxu0 0
    %1359 = vmatprep.mubr.bf16.mxu0 0
    %1360 = vmatmul.mubr.bf16.gmra.mrb[0].mxu0 %v1255
    %v1361 = vpop.f32.mrb[0].mxu0
    %v1362 = vadd.f32 %v1277, %v1361
    %v1363 = vpop.f32.mrb[0].mxu0
    %v1364 = vpop.f32.mrb[0].mxu0
    %v1365 = vpop.f32.mrb[0].mxu0
    %1366 = vdwg.mxu0
    %1367 = vst [vmem:[#allocation11] sm:$0xff] %v1362
    // Predicated region
    $region58: #{tpu_custom_call.1} parent=1 // pred_check
      _
    $region59: #{tpu_custom_call.1} parent=1 // pred_check_branch
      %1369 = sbr.rel (0) target = $region61
    $region60: #{tpu_custom_call.1} parent=1 // pred_region
      %s1371 = ssub.s32 128, 128
      %1372 = vsyncadd [#allocation4], %s1371
      %s1374 = sshll.u32 [#allocation11], 4
      %s1375 = int_to_ptr.vmem [resolvable:$true] %s1374
      %1377 = dma.vmem_to_hbm [thread:$0]  %s1375, 128, %s9, [#allocation4]
    $region61: #{tpu_custom_call.1} parent=1 // pred_fallthru
      _
    // Predicated region
    $region62: #{tpu_custom_call.1} parent=1 // pred_check
      _
    $region63: #{tpu_custom_call.1} parent=1 // pred_check_branch
      %1379 = sbr.rel (0) target = $region65
    $region64: #{tpu_custom_call.1} parent=1 // pred_region
      %1380 = dma.done [#allocation4], 128
    $region65: #{tpu_custom_call.1} parent=1 // pred_fallthru
      _
    %1381 = vsyncpa [#allocation3], 1
    %1382 = vsyncpa [#allocation6], 1
    %1383 = vsyncpa [#allocation9], 1
    %1384 = vsyncpa [#allocation4], 1

</llo_original>
